<compile_context>
chip_gen: v7x
topology: tpu7x:2x2x1
jax: 0.10.0
libtpu: 0.0.40
codegen_flags: <defaults>
</compile_context>

<pallas_src>
import numpy as np
import jax
import jax.numpy as jnp
from jax import lax
from jax.experimental import pallas as pl
from jax.experimental.pallas import tpu as pltpu


def _round_up(x: int, m: int) -> int:
    return (x + m - 1) // m * m


def _vmem_capacity_bytes() -> int:
    try:
        return int(pltpu.get_tpu_info().vmem_capacity_bytes)
    except Exception:
        return 64 << 20   # conservative default: v7x per-TC VMEM


# ----------------------------------------------------------------------------
# Fast path: structured repeat  (idx == repeat(arange(N), F))
# ----------------------------------------------------------------------------
def _repeat_lanes_kernel(feats_ref, out_ref):
    """Lane-dense block repeat: out[:, f*C:(f+1)*C] = feats for every f < F."""
    src = feats_ref[...]                               # [BLK, C]
    reps = out_ref.shape[-1] // feats_ref.shape[-1]
    if reps == 1:
        out_ref[...] = src
    else:
        # Full (BLK, F*C) tile built before a single unmasked store.
        # TODO(synk): if a config gives F*C that is not a multiple of 128,
        # pack several source rows per output row to keep the store lane-dense.
        out_ref[...] = jnp.concatenate([src] * reps, axis=-1)   # [BLK, F*C]


def upsample_repeat(feats: jax.Array, reps: int) -> jax.Array:
    """feats[repeat(arange(N), reps)] as a streaming, lane-dense tile repeat."""
    N, C = feats.shape
    itemsize = jnp.dtype(feats.dtype).itemsize
    out_row_bytes = reps * C * itemsize

    # HBM-bound kernel: target a ~4 MiB output tile per grid step (amortizes
    # the ~0.35 us fixed per-step overhead), but keep >=2 grid steps whenever
    # N allows so the "parallel" axis can shard across both v7x TensorCores.
    blk_cap = max(8, min(4096, (4 << 20) // max(out_row_bytes, 1) // 8 * 8))
    if N >= 8:
        blk = max(8, min(blk_cap, _round_up(pl.cdiv(N, 2), 8), (N // 8) * 8))
    else:
        blk = N                      # full-extent block for tiny inputs

    grid = (pl.cdiv(N, blk),)

    # Pallas double-buffers the in + out tiles; budget that explicitly.
    needed = 2 * blk * C * (1 + reps) * itemsize
    vmem_limit = int(min(48 << 20, max(32 << 20, needed + (8 << 20))))

    out = pl.pallas_call(
        _repeat_lanes_kernel,
        out_shape=jax.ShapeDtypeStruct((N, reps * C), feats.dtype),
        grid=grid,
        in_specs=[pl.BlockSpec((blk, C), lambda i: (i, 0))],
        out_specs=pl.BlockSpec((blk, reps * C), lambda i: (i, 0)),
        compiler_params=pltpu.CompilerParams(
            dimension_semantics=("parallel",),   # independent blocks -> 2 TCs on v7x
            vmem_limit_bytes=vmem_limit),
    )(feats)
    # [N, reps*C] -> [N*reps, C] is a contiguous (free) reshape; no pad, no slice.
    return out.reshape(N * reps, C)


# ----------------------------------------------------------------------------
# General fallback: arbitrary idx row gather  out[m, :] = feats[idx[m], :]
# ----------------------------------------------------------------------------
def _onehot_gather_kernel(idx_ref, feats_ref, out_ref):
    """Vectorized row gather for one output block (one-hot MXU gather).

    idx_ref  : VMEM int32 [BLK, 1]   (this block's gather indices)
    feats_ref: VMEM       [N, C]     (resident sparse feature table)
    out_ref  : VMEM       [BLK, C]   (current output row block)
    """
    n = feats_ref.shape[0]
    idx = idx_ref[...]                                        # [BLK, 1]
    cols = lax.broadcasted_iota(jnp.int32, (idx.shape[0], n), 1)
    onehot = (cols == idx).astype(jnp.float32)                # [BLK, N], 0/1
    # Exact: each output row is feats[idx]*1 plus zeros (f32 accumulate).
    # Out-of-range idx (e.g. ragged-block padding) yields an all-zero row,
    # so no out-of-bounds VMEM read is ever issued.
    gathered = jnp.dot(onehot, feats_ref[...].astype(jnp.float32),
                       preferred_element_type=jnp.float32)    # [BLK, C]
    out_ref[...] = gathered.astype(out_ref.dtype)


def gather_rows(feats: jax.Array, idx: jax.Array) -> jax.Array:
    """General Pallas row gather: feats[idx] for arbitrary idx (fallback path)."""
    N, C = feats.shape
    M = int(idx.shape[0])
    itemsize = jnp.dtype(feats.dtype).itemsize

    # Output rows per grid step: keep the per-block one-hot (BLK, N) around
    # <= 2 MiB, BLK a multiple of 8 and not larger than M.
    if M >= 8:
        blk = max(8, min(1024, ((2 << 20) // (4 * max(N, 1))) // 8 * 8,
                         (M // 8) * 8))
    else:
        blk = M                                   # full-extent block
    grid = (pl.cdiv(M, blk),)

    idx2d = idx.astype(jnp.int32).reshape(M, 1)   # streamed per block, no SMEM prefetch

    # Resident feats table (double-buffered by the pipeline) + block buffers
    # must fit comfortably inside physical VMEM (v7x: 64 MiB per TC).
    # TODO(synk): single-buffer the resident table (pl.Buffered(1)) and add a
    # streamed HBM DMA-gather variant for tables that do not fit VMEM.
    needed = (2 * N * C * itemsize                       # resident feats (x2 buffers)
              + 2 * blk * (C * itemsize + 4)             # out + idx blocks (x2)
              + 2 * blk * _round_up(N, 128) * 4          # one-hot / matmul temporaries
              + (4 << 20))                               # headroom
    cap = _vmem_capacity_bytes() * 3 // 4
    if needed > cap:
        raise ValueError('gather_rows: feature table too large to keep resident in '
                         f'VMEM ({needed} > {cap} bytes); streamed gather not implemented.')
    vmem_limit = int(min(max(needed, 32 << 20), cap))

    out = pl.pallas_call(
        _onehot_gather_kernel,
        out_shape=jax.ShapeDtypeStruct((M, C), feats.dtype),
        grid=grid,
        in_specs=[pl.BlockSpec((blk, 1), lambda i: (i, 0)),     # this block's idx
                  pl.BlockSpec((N, C), lambda i: (0, 0))],      # resident feats table
        out_specs=pl.BlockSpec((blk, C), lambda i: (i, 0)),
        compiler_params=pltpu.CompilerParams(
            dimension_semantics=("parallel",),
            vmem_limit_bytes=vmem_limit),
    )(idx2d, feats)
    return out


def _is_structured_repeat(idx, n_src: int, reps: int) -> bool:
    idx_np = np.asarray(idx)              # one host sync; result is cached by the caller
    if idx_np.ndim != 1 or idx_np.shape[0] != n_src * reps:
        return False
    return bool(np.array_equal(idx_np, np.repeat(np.arange(n_src), reps)))


# ----------------------------------------------------------------------------
# Minimal SparseTensor stand-in + SparseUpsample module (glue in plain JAX)
# ----------------------------------------------------------------------------
class SparseTensor:
    def __init__(self, feats, coords, shape, layout, scale=(1, 1, 1),
                 spatial_cache=None):
        self.feats = feats
        self.coords = coords
        self.shape = shape
        self.layout = layout
        self._scale = scale
        self._spatial_cache = spatial_cache if spatial_cache is not None else {}

    def get_spatial_cache(self, key):
        return self._spatial_cache.get(key)


class SparseUpsample:
    """Nearest-neighbor upsample of a sparse tensor by `factor`."""

    def __init__(self, factor):
        self.factor = tuple(factor) if isinstance(factor, (list, tuple)) else factor

    def __call__(self, input: SparseTensor) -> SparseTensor:
        DIM = input.coords.shape[-1] - 1
        factor = self.factor if isinstance(self.factor, tuple) else (self.factor,) * DIM
        assert DIM == len(factor), \
            'Input coordinates must have the same dimension as the upsample factor.'
        new_coords = input.get_spatial_cache(f'upsample_{factor}_coords')
        new_layout = input.get_spatial_cache(f'upsample_{factor}_layout')
        idx = input.get_spatial_cache(f'upsample_{factor}_idx')
        if any(x is None for x in [new_coords, new_layout, idx]):
            raise ValueError('Upsample cache not found. SparseUpsample must be '
                             'paired with SparseDownsample.')
        N = input.feats.shape[0]
        F = int(np.prod(factor))

        # Cache the structured-repeat flag so the device->host idx inspection
        # happens at most once per spatial cache (keeps dispatch async afterwards).
        flag_key = f'upsample_{factor}_idx_is_repeat'
        is_repeat = input.get_spatial_cache(flag_key)
        if is_repeat is None:
            is_repeat = _is_structured_repeat(idx, N, F)
            input._spatial_cache[flag_key] = is_repeat

        if is_repeat:
            new_feats = upsample_repeat(input.feats, F)   # fast streaming path
        else:
            new_feats = gather_rows(input.feats, idx)     # general vectorized gather
        out = SparseTensor(new_feats, new_coords, input.shape, new_layout,
                           scale=tuple(s * f for s, f in zip(input._scale, factor)),
                           spatial_cache=input._spatial_cache)
        return out


# ----------------------------------------------------------------------------
# Deterministic synthetic "downsample cache" construction (plain numpy / JAX)
# ----------------------------------------------------------------------------
def build_upsample_cache(coords, factor):
    """Build (new_coords, new_layout, idx) as SparseDownsample would cache them."""
    N = coords.shape[0]
    fx, fy, fz = factor
    offs = np.stack(np.meshgrid(np.arange(fx), np.arange(fy), np.arange(fz),
                                indexing='ij'), axis=-1).reshape(-1, 3)      # [F, 3]
    F = offs.shape[0]
    coords_np = np.asarray(coords)
    batch = np.repeat(coords_np[:, :1], F, axis=0)                           # [N*F, 1]
    xyz = (coords_np[:, None, 1:] * np.array(factor)[None, None, :]
           + offs[None, :, :]).reshape(-1, 3)                                # [N*F, 3]
    new_coords = jnp.asarray(np.concatenate([batch, xyz], axis=1), dtype=jnp.int32)
    idx = jnp.asarray(np.repeat(np.arange(N), F), dtype=jnp.int32)           # [N*F]
    new_layout = [(0, N * F)]                                                # metadata
    return new_coords, new_layout, idx


# ----------------------------------------------------------------------------
if __name__ == "__main__":
    key = jax.random.PRNGKey(0)
    k_feat, k_coord, k_idx = jax.random.split(key, 3)

    N, C = 20, 32                      # coarse sparse points (not a multiple of 8), channels
    factor = (2, 2, 2)                 # 3D nearest-neighbor upsample
    F = factor[0] * factor[1] * factor[2]
    M = N * F

    feats = jax.random.normal(k_feat, (N, C), dtype=jnp.float32)
    # coarse coords: (batch, x, y, z) in a 4^3 grid, batch=0
    xyz = jax.random.randint(k_coord, (N, 3), 0, 4, dtype=jnp.int32)
    coords = jnp.concatenate([jnp.zeros((N, 1), jnp.int32), xyz], axis=1)

    new_coords, new_layout, idx = build_upsample_cache(coords, factor)
    spatial_cache = {
        f'upsample_{factor}_coords': new_coords,
        f'upsample_{factor}_layout': new_layout,
        f'upsample_{factor}_idx': idx,
    }

    x = SparseTensor(feats, coords, shape=(1, C), layout=[(0, N)],
                     scale=(1, 1, 1), spatial_cache=spatial_cache)

    up = SparseUpsample(factor)
    out = up(x)
    jax.block_until_ready(out.feats)

    # Reference check against plain-JAX gather (fast structured path).
    ref = jnp.take(feats, idx, axis=0)
    np.testing.assert_allclose(np.asarray(out.feats), np.asarray(ref),
                               rtol=0, atol=0)
    assert out.feats.shape == (M, C)
    assert out._scale == (2, 2, 2)
    # Second call uses the cached structured-repeat flag (no host sync).
    out2 = up(x)
    jax.block_until_ready(out2.feats)
    np.testing.assert_allclose(np.asarray(out2.feats), np.asarray(ref),
                               rtol=0, atol=0)

    # Also exercise the general (unstructured-idx) vectorized gather fallback,
    # with a length that is NOT a multiple of 8 or of the block size.
    rand_idx = jax.random.randint(k_idx, (100,), 0, N, dtype=jnp.int32)
    got = gather_rows(feats, rand_idx)
    jax.block_until_ready(got)
    np.testing.assert_allclose(np.asarray(got),
                               np.asarray(jnp.take(feats, rand_idx, axis=0)),
                               rtol=0, atol=0)

    print("KERNEL_OK")
</pallas_src>

<mosaic_0001>
module attributes {stable_mosaic.version = 11 : i64} {
  func.func @_repeat_lanes_kernel(%arg0: i32, %arg1: memref<16x32xf32, #tpu.memory_space<vmem>>, %arg2: memref<16x256xf32, #tpu.memory_space<vmem>>) attributes {dimension_semantics = [#tpu.dimension_semantics<parallel>], iteration_bounds = array<i64: 2>, scalar_prefetch = 0 : i64, scratch_operands = 0 : i64, tpu.core_type = #tpu.core_type<tc>, window_params = [{transform_indices = @transform_0, window_bounds = array<i64: 16, 32>}, {transform_indices = @transform_1, window_bounds = array<i64: 16, 256>}]} {
    %c0 = arith.constant 0 : index
    %c0_0 = arith.constant 0 : index
    %0 = vector.load %arg1[%c0, %c0_0] : memref<16x32xf32, #tpu.memory_space<vmem>>, vector<16x32xf32>
    %1 = tpu.concatenate %0, %0, %0, %0, %0, %0, %0, %0 in 1 : vector<16x32xf32>, vector<16x32xf32>, vector<16x32xf32>, vector<16x32xf32>, vector<16x32xf32>, vector<16x32xf32>, vector<16x32xf32>, vector<16x32xf32> -> vector<16x256xf32>
    %c0_1 = arith.constant 0 : index
    %c0_2 = arith.constant 0 : index
    %2 = vector.load %arg2[%c0_1, %c0_2] : memref<16x256xf32, #tpu.memory_space<vmem>>, vector<16x256xf32>
    tpu.vector_store %arg2[%c0_1, %c0_2], %1 {strides = array<i32>} : memref<16x256xf32, #tpu.memory_space<vmem>>, vector<16x256xf32>,
    return
  }
  func.func @transform_0(%arg0: i32) -> (i32, i32) {
    %c0_i32 = arith.constant 0 : i32
    %c0_i32_0 = arith.constant 0 : i32
    return %arg0, %c0_i32 : i32, i32
  }
  func.func @transform_1(%arg0: i32) -> (i32, i32) {
    %c0_i32 = arith.constant 0 : i32
    %c0_i32_0 = arith.constant 0 : i32
    return %arg0, %c0_i32 : i32, i32
  }
}

</mosaic_0001>

<llo_original>
// kernel: tpu_custom_call.1
$region0: #{tpu_custom_call.1}
  #allocation0 [shape = 'u32[]', space=smem, size = 0x4, offset = 0x4, fixed_abs, tag = 'smem constant byte address 0x4 - core index']
  #allocation1 [shape = 'u32[144,128]{1,0:T(1,128)}', space=vmem, size = 0x12000, scoped, tag = 'internal scratch']
  %s0 = inlined_call_operand.hbm [shape: f32[20,32], index: 0, kind: input, shape index: {}]
  %s1 = inlined_call_operand.hbm [shape: f32[20,256], index: 1, kind: output, shape index: {}]
  %s2 = sld [smem:[#allocation0]]
  $region41: #{tpu_custom_call.1} parent=0
    _
  %s4 = ssub.s32 1, %s2
  %s5 = scalar_select 0, %s4, %s2
  $region1: #{tpu_custom_call.1} parent=0
    #allocation2 [shape = 'u8[16384]{0}', space=vmem, size = 0x4000, scoped, tag = 'input window, operand 0']
    #allocation3 [shape = 's32[2]{0}', space=sflag, size = 0x8, scoped, tag = 'scoped memory for tpu_custom_call.1']
    #allocation4 [shape = 's32[2]{0}', space=sflag, size = 0x8, scoped, tag = 'scoped memory for tpu_custom_call.1']
    #allocation5 [shape = 'u8[32768]{0}', space=vmem, size = 0x8000, scoped, tag = 'output window, operand 0']
    %6 = vsyncpa [#allocation3], 0
    %s7 = scalar_lea.sflag [#allocation3], 1
    %8 = vsyncpa %s7, 0
    %9 = vsyncpa [#allocation4], 0
    %s10 = scalar_lea.sflag [#allocation4], 1
    %11 = vsyncpa %s10, 0
    loop: start=0, step=1, limit=4
    $region2: #{tpu_custom_call.1} parent=1 // loop_pre_header
      _
    $region3: #{tpu_custom_call.1} parent=1 // loop_header
      %s13 = sphi 0, %s17
      %p14 = scmp.ge.s32.totalorder %s13, 4
      %s23 = sphi 0, %s25
      %s26 = sphi 0, %s23
      %s27 = sphi 0, %s26
      %s43 = sphi 0, %s27
      %s49 = sphi 0, %s51
      %s52 = sphi 0, %s49
      %s53 = sphi 0, %s52
      %s69 = sphi 0, %s53
    $region4: #{tpu_custom_call.1} parent=1 // loop_header_branch
      %16 = sbr.rel (%p14) target = $region8
    $region5: #{tpu_custom_call.1} parent=1 // loop_body
      %s18 = ssub.s32 %s13, 1
      %s19 = ssub.s32 %s13, 2
      %s20 = sadd.s32 %s13, 1
      %s21 = ssub.s32 %s13, %s20
      %p22 = scmp.eq.s32.totalorder %s21, 0
      %s24 = sadd.s32 %s23, 1
      %s25 = scalar_select %p22, %s23, %s24
      %p28 = pneg %p22
      %p29 = scmp.eq.s32.totalorder %s13, 1
      %p30 = por %p28, %p29
      %p31 = scmp.ne.s32.totalorder %s23, %s26
      %p32 = scmp.eq.s32.totalorder %s13, 0
      %p33 = por %p31, %p32
      %p34 = scmp.ne.s32.totalorder %s23, %s26
      %p35 = scmp.eq.s32.totalorder %s18, 1
      %p36 = por %p34, %p35
      %p37 = scmp.ne.s32.totalorder %s26, %s27
      %p38 = scmp.eq.s32.totalorder %s18, 0
      %p39 = por %p37, %p38
      %p40 = scmp.ne.s32.totalorder %s26, %s27
      %p41 = scmp.eq.s32.totalorder %s19, 1
      %p42 = por %p40, %p41
      %p44 = scmp.ne.s32.totalorder %s27, %s43
      %p45 = scmp.eq.s32.totalorder %s19, 0
      %p46 = por %p44, %p45
      %s47 = ssub.s32 %s13, %s20
      %p48 = scmp.eq.s32.totalorder %s47, 0
      %s50 = sadd.s32 %s49, 1
      %s51 = scalar_select %p48, %s49, %s50
      %p54 = pneg %p48
      %p55 = scmp.eq.s32.totalorder %s13, 1
      %p56 = por %p54, %p55
      %p57 = scmp.ne.s32.totalorder %s49, %s52
      %p58 = scmp.eq.s32.totalorder %s13, 0
      %p59 = por %p57, %p58
      %p60 = scmp.ne.s32.totalorder %s49, %s52
      %p61 = scmp.eq.s32.totalorder %s18, 1
      %p62 = por %p60, %p61
      %p63 = scmp.ne.s32.totalorder %s52, %s53
      %p64 = scmp.eq.s32.totalorder %s18, 0
      %p65 = por %p63, %p64
      %p66 = scmp.ne.s32.totalorder %s52, %s53
      %p67 = scmp.eq.s32.totalorder %s19, 1
      %p68 = por %p66, %p67
      %p70 = scmp.ne.s32.totalorder %s53, %s69
      %p71 = scmp.eq.s32.totalorder %s19, 0
      %p72 = por %p70, %p71
      %p73 = scmp.le.s32.totalorder 1, %s13
      %p74 = scmp.lt.s32.totalorder %s13, 3
      %p75 = pnand %p73, %p74
      %p76 = pneg %p75
      // Predicated region
      $region9: #{tpu_custom_call.1} parent=5 // pred_check
        _
      $region10: #{tpu_custom_call.1} parent=5 // pred_check_branch
        %78 = sbr.rel (%p75) target = $region12
      $region11: #{tpu_custom_call.1} parent=5 // pred_region
        %s79 = ssub.s32 %s13, 1
      $region12: #{tpu_custom_call.1} parent=5 // pred_fallthru
        _
      %p80 = scmp.lt.s32.totalorder %s13, 2
      // Predicated region
      $region13: #{tpu_custom_call.1} parent=5 // pred_check
        %p81 = pneg %p80
      $region14: #{tpu_custom_call.1} parent=5 // pred_check_branch
        %83 = sbr.rel (%p81) target = $region16
      $region15: #{tpu_custom_call.1} parent=5 // pred_region
        // Predicated region
        $region17: #{tpu_custom_call.1} parent=15 // pred_check
          %p84 = pneg %p33
        $region18: #{tpu_custom_call.1} parent=15 // pred_check_branch
          %86 = sbr.rel (%p84) target = $region20
        $region19: #{tpu_custom_call.1} parent=15 // pred_region
          %s87 = sand.u32 %s23, 1
          %s88 = scalar_lea.sflag [#allocation3], %s87
          %s89 = sand.u32 %s23, 1
          %s90 = smul.addr %s89, 16
          %s91 = scalar_lea.vmem [#allocation2], %s90
          %s92 = smul.u32 2, %s13
          %s93 = ssub.s32 3, %s92
          %p94 = scmp.lt.s32.totalorder %s93, 2
          %s95 = scalar_select %p94, %s93, 2
          %s96 = smul.u32 128, %s95
          %s98 = ssub.s32 256, %s96
          %99 = vsyncadd %s88, %s98
          %p100 = scmp.ne.s32.totalorder 0, %s96
          %s101 = smul.addr %s92, 128
          %s102 = scalar_lea.hbm %s0, %s101
          %s103 = smul.u32 8, %s95
          %s104 = sshll.u32 %s91, 4
          %s105 = int_to_ptr.vmem [resolvable:$true] %s104
          %s106 = sshll.u32 %s103, 4
          %110 = dma.hbm_to_vmem [thread:$0]  (%p100), %s102, %s106, %s105, %s88, 128, 128, 8
        $region20: #{tpu_custom_call.1} parent=15 // pred_fallthru
          _
      $region16: #{tpu_custom_call.1} parent=5 // pred_fallthru
        _
      %p111 = scmp.le.s32.totalorder 1, %s13
      %p112 = scmp.lt.s32.totalorder %s13, 3
      %p113 = pnand %p111, %p112
      %p114 = pneg %p113
      // Predicated region
      $region21: #{tpu_custom_call.1} parent=5 // pred_check
        _
      $region22: #{tpu_custom_call.1} parent=5 // pred_check_branch
        %116 = sbr.rel (%p113) target = $region24
      $region23: #{tpu_custom_call.1} parent=5 // pred_region
        %s117 = ssub.s32 %s13, 1
        %s118 = sand.u32 %s26, 1
        %s119 = scalar_lea.sflag [#allocation3], %s118
        %s120 = sand.u32 %s26, 1
        %s121 = smul.addr %s120, 16
        %s122 = scalar_lea.vmem [#allocation2], %s121
        // Predicated region
        $region25: #{tpu_custom_call.1} parent=23 // pred_check
          %p123 = pneg %p39
        $region26: #{tpu_custom_call.1} parent=23 // pred_check_branch
          %125 = sbr.rel (%p123) target = $region28
        $region27: #{tpu_custom_call.1} parent=23 // pred_region
          %126 = dma.done %s119, 256
        $region28: #{tpu_custom_call.1} parent=23 // pred_fallthru
          _
        %s127 = sand.u32 %s26, 1
        %s128 = scalar_lea.sflag [#allocation3], %s127
        %s129 = sand.u32 %s26, 1
        %s130 = smul.addr %s129, 16
        %s131 = scalar_lea.vmem [#allocation2], %s130
        %p132 = pneg %p39
        %p133 = pneg %p36
        %p134 = pneg %p65
        %p135 = pneg %p62
        %s136 = sand.u32 %s52, 1
        %s137 = scalar_lea.sflag [#allocation4], %s136
        %s138 = sand.u32 %s52, 1
        %s139 = smul.addr %s138, 32
        %s140 = scalar_lea.vmem [#allocation5], %s139
        %s141 = smul.u32 2, %s18
        %s142 = ssub.s32 3, %s141
        %p143 = scmp.lt.s32.totalorder %s142, 2
        %s144 = scalar_select %p143, %s142, 2
        %s145 = smul.u32 128, %s144
        %s146 = smul.u32 2, %s18
        %s147 = ssub.s32 3, %s146
        %p148 = scmp.lt.s32.totalorder %s147, 2
        %s149 = scalar_select %p148, %s147, 2
        %s150 = smul.u32 128, %s149
        %s151 = smul.u32 %s150, 2
        %v152 = vld [vmem:[%s122] sm:$0xff]
        %v153 = vld [vmem:[%s122 + $0x8] sm:$0xff]
        %156 = vrot.lane.b32.xlu0 %v152, 32
        %v157 = vpop.permute.xlu0 %156
        %158 = vrot.lane.b32.xlu0 %v153, 32
        %v159 = vpop.permute.xlu0 %158
        %162 = vrot.lane.b32.xlu0 %v152, 64
        %v163 = vpop.permute.xlu0 %162
        %164 = vrot.lane.b32.xlu0 %v153, 64
        %v165 = vpop.permute.xlu0 %164
        %168 = vrot.lane.b32.xlu0 %v152, 96
        %v169 = vpop.permute.xlu0 %168
        %170 = vrot.lane.b32.xlu0 %v153, 96
        %v171 = vpop.permute.xlu0 %170
        %vm174 = vcmask 261120
        %v175 = vsel %vm174, %v152, %v157
        %v176 = vsel %vm174, %v153, %v159
        %vm177 = vcmask 523264
        %v178 = vsel %vm177, %v175, %v163
        %v179 = vsel %vm177, %v176, %v165
        %vm180 = vcmask 785408
        %v181 = vsel %vm180, %v178, %v169
        %v182 = vsel %vm180, %v179, %v171
        %183 = vst [vmem:[%s140] sm:$0xff] %v181
        %184 = vst [vmem:[%s140 + $0x8] sm:$0xff] %v181
        %185 = vst [vmem:[%s140 + $0x10] sm:$0xff] %v182
        %186 = vst [vmem:[%s140 + $0x18] sm:$0xff] %v182
        %s187 = sand.u32 %s52, 1
        %s188 = scalar_lea.sflag [#allocation4], %s187
        %s189 = sand.u32 %s52, 1
        %s190 = smul.addr %s189, 32
        %s191 = scalar_lea.vmem [#allocation5], %s190
        // Predicated region
        $region29: #{tpu_custom_call.1} parent=23 // pred_check
          %p192 = pneg %p62
        $region30: #{tpu_custom_call.1} parent=23 // pred_check_branch
          %194 = sbr.rel (%p192) target = $region32
        $region31: #{tpu_custom_call.1} parent=23 // pred_region
          %s195 = smul.u32 2, %s18
          %s196 = ssub.s32 3, %s195
          %p197 = scmp.lt.s32.totalorder %s196, 2
          %s198 = scalar_select %p197, %s196, 2
          %s199 = smul.u32 128, %s198
          %s200 = smul.u32 %s199, 2
          %s202 = ssub.s32 512, %s200
          %203 = vsyncadd %s188, %s202
          %p204 = scmp.ne.s32.totalorder 0, %s200
          %s205 = smul.addr %s195, 2
          %s206 = smul.addr %s205, 128
          %s207 = scalar_lea.hbm %s1, %s206
          %s208 = smul.u32 16, %s198
          %s209 = sshll.u32 %s191, 4
          %s210 = int_to_ptr.vmem [resolvable:$true] %s209
          %s211 = sshll.u32 %s208, 4
          %215 = dma.vmem_to_hbm [thread:$0]  (%p204), %s210, %s211, %s207, %s188, 256, 256, 16
        $region32: #{tpu_custom_call.1} parent=23 // pred_fallthru
          _
      $region24: #{tpu_custom_call.1} parent=5 // pred_fallthru
        _
      %p216 = scmp.le.s32.totalorder 2, %s13
      // Predicated region
      $region33: #{tpu_custom_call.1} parent=5 // pred_check
        %p217 = pneg %p216
      $region34: #{tpu_custom_call.1} parent=5 // pred_check_branch
        %219 = sbr.rel (%p217) target = $region36
      $region35: #{tpu_custom_call.1} parent=5 // pred_region
        %s220 = ssub.s32 %s13, 2
        // Predicated region
        $region37: #{tpu_custom_call.1} parent=35 // pred_check
          %p221 = pneg %p68
        $region38: #{tpu_custom_call.1} parent=35 // pred_check_branch
          %223 = sbr.rel (%p221) target = $region40
        $region39: #{tpu_custom_call.1} parent=35 // pred_region
          %s224 = sand.u32 %s53, 1
          %s225 = scalar_lea.sflag [#allocation4], %s224
          %s226 = sand.u32 %s53, 1
          %s227 = smul.addr %s226, 32
          %s228 = scalar_lea.vmem [#allocation5], %s227
          %229 = dma.done %s225, 512
        $region40: #{tpu_custom_call.1} parent=35 // pred_fallthru
          _
      $region36: #{tpu_custom_call.1} parent=5 // pred_fallthru
        _
    $region6: #{tpu_custom_call.1} parent=1 // loop_footer
      %s17 = sadd.s32 1, %s13
    $region7: #{tpu_custom_call.1} parent=1 // loop_footer_branch
      %12 = sbr.rel target = $region3
    $region8: #{tpu_custom_call.1} parent=1 // loop_exit
      _
    %230 = vsyncpa [#allocation3], 1
    %s231 = scalar_lea.sflag [#allocation3], 1
    %232 = vsyncpa %s231, 1
    %233 = vsyncpa [#allocation4], 1
    %s234 = scalar_lea.sflag [#allocation4], 1
    %235 = vsyncpa %s234, 1

</llo_original>
